<compile_context>
chip_gen: v5e
topology: v5e:2x2
jax: 0.10.0
libtpu: 0.0.40
codegen_flags: <defaults>
</compile_context>

<pallas_src>
import functools

import jax
import jax.numpy as jnp
from jax import lax
from jax.experimental import pallas as pl
from jax.experimental.pallas import tpu as pltpu

_LANES = 128
# ~4 MiB per input block (padded bytes). 2 inputs x 2 pipeline buffers plus two
# f32 accumulator scratch blocks stay well under the requested 48 MiB scoped
# VMEM (v7x physical VMEM is 64 MiB/TC; v5e/v6e have 128 MiB).
_TARGET_BLOCK_BYTES = 4 << 20
_VMEM_LIMIT_BYTES = 48 << 20


def _round_up(x, m):
    return ((x + m - 1) // m) * m


def _choose_tile_h(H, W, dtypes, target_bytes):
    """Largest sublane-aligned tile_h whose padded (tile_h, W) block fits target.

    Dtype-aware: sublane multiple is 8 for 32-bit, 16 for 16-bit, 32 for 8-bit
    elements; row bytes use the real itemsize plus the 128-lane VMEM padding.
    No divisor-of-H requirement -- ragged tail rows are masked in-kernel.
    """
    itemsize = max(jnp.dtype(dt).itemsize for dt in dtypes)
    sublane = max(32 // itemsize, 8)
    row_bytes = _round_up(max(W, 1), _LANES) * itemsize
    tile_h = (target_bytes // row_bytes) // sublane * sublane
    tile_h = max(tile_h, sublane)
    if tile_h >= H:
        return H  # full-H block: always a legal block shape
    return tile_h


def _mse_loss_kernel(pred_ref, gt_ref, sum_ref, cnt_ref, sum_acc, cnt_acc,
                     *, tile_h, h_total, needs_mask):
    """One (1, 1, tile_h, W) tile of channel-0 prediction and gt per grid step.

    Grid is (batch, spatial-half, H-tiles). Partial sums/counts accumulate in
    block-shaped VMEM scratch over the innermost 'arbitrary' H-tile axis and
    are reduced once into the resident (1, 1, 1, 1) output block on the last
    tile. Batch and spatial-half axes are 'parallel' (megacore on v7x).
    """
    j = pl.program_id(2)

    @pl.when(j == 0)
    def _():
        sum_acc[...] = jnp.zeros_like(sum_acc)
        cnt_acc[...] = jnp.zeros_like(cnt_acc)

    p = pred_ref[...].astype(jnp.float32)
    g = gt_ref[...].astype(jnp.float32)
    mask = g > 0.0
    if needs_mask:
        # Ragged tail / overshoot tiles: rows whose *intended* global index is
        # >= H read undefined (or clamped, duplicated) data -- mask them out.
        t = pl.program_id(1) * pl.num_programs(2) + j
        rows = lax.broadcasted_iota(jnp.int32, gt_ref.shape, 2)
        mask = jnp.logical_and(mask, (rows + t * tile_h) < h_total)

    err = jnp.where(mask, p - g, 0.0)  # mask folded into the select
    # Elementwise vector accumulation: no per-step cross-lane reduction trees.
    sum_acc[...] += err * err
    cnt_acc[...] += mask.astype(jnp.float32)

    @pl.when(j == pl.num_programs(2) - 1)
    def _():
        sum_ref[...] = jnp.sum(sum_acc[...], keepdims=True)
        cnt_ref[...] = jnp.sum(cnt_acc[...], keepdims=True)


@functools.partial(jax.jit, static_argnames=("target_block_bytes",))
def mse_loss(prediction, gt, *, target_block_bytes=_TARGET_BLOCK_BYTES):
    """Pallas equivalent of MSE_loss.forward(prediction, gt) -> scalar f32.

    prediction: (N, C, H, W); gt: (N, 1, H, W).
    """
    N, C, H, W = prediction.shape
    tile_h = _choose_tile_h(H, W, (prediction.dtype, gt.dtype),
                            target_block_bytes)
    n_tiles = (H + tile_h - 1) // tile_h

    # Split the H-tile reduction across both v7x TensorCores when it is big
    # enough that the (at most one) redundant, fully-masked tile is cheap.
    P = 2 if (n_tiles >= 2 and n_tiles % 2 == 0) or n_tiles >= 8 else 1
    T = (n_tiles + P - 1) // P
    last_blk = n_tiles - 1
    needs_mask = (P * T * tile_h) != H

    if P * T == n_tiles:
        # Every (half, tile) pair maps to a distinct real block.
        in_map = lambda i, p, j: (i, 0, p * T + j, 0)
    else:
        # Clamp so the DMA never targets a block wholly past H; the kernel
        # zeroes such tiles via the *intended* row offset mask.
        in_map = lambda i, p, j: (i, 0, jnp.minimum(p * T + j, last_blk), 0)

    kernel = functools.partial(_mse_loss_kernel, tile_h=tile_h, h_total=H,
                               needs_mask=needs_mask)

    sums, cnts = pl.pallas_call(
        kernel,
        out_shape=(
            jax.ShapeDtypeStruct((P, N, 1, 1), jnp.float32),
            jax.ShapeDtypeStruct((P, N, 1, 1), jnp.float32),
        ),
        grid_spec=pltpu.PrefetchScalarGridSpec(
            num_scalar_prefetch=0,
            grid=(N, P, T),
            in_specs=[
                # Channel-0 slice of prediction taken directly via index_map:
                # no HBM round-trip through a wrapper slice/reshape/pad copy.
                pl.BlockSpec((1, 1, tile_h, W), in_map),
                pl.BlockSpec((1, 1, tile_h, W), in_map),
            ],
            out_specs=[
                pl.BlockSpec((1, 1, 1, 1), lambda i, p, j: (p, i, 0, 0)),
                pl.BlockSpec((1, 1, 1, 1), lambda i, p, j: (p, i, 0, 0)),
            ],
            scratch_shapes=[
                pltpu.VMEM((1, 1, tile_h, W), jnp.float32),
                pltpu.VMEM((1, 1, tile_h, W), jnp.float32),
            ],
        ),
        compiler_params=pltpu.CompilerParams(
            dimension_semantics=("parallel", "parallel", "arbitrary"),
            vmem_limit_bytes=_VMEM_LIMIT_BYTES,
        ),
    )(prediction, gt)

    # Per-(half, batch) partials -> global masked mean (NaN if gt has no
    # positive element, matching torch.mean over an empty selection).
    return jnp.sum(sums) / jnp.sum(cnts)


def _reference(prediction, gt):
    err = prediction[:, 0:1] - gt
    mask = gt > 0
    return jnp.sum(jnp.where(mask, err * err, 0.0)) / jnp.sum(mask)


if __name__ == "__main__":
    key = jax.random.PRNGKey(0)
    k1, k2, k3, k4 = jax.random.split(key, 4)

    # Primary small test, shapes consistent with the module.
    N, C, H, W = 2, 4, 16, 16
    prediction = jax.random.normal(k1, (N, C, H, W), dtype=jnp.float32)
    gt = jax.random.normal(k2, (N, 1, H, W), dtype=jnp.float32)
    gt = jnp.where(gt > 0.3, gt, 0.0)  # non-trivial (gt > 0) mask

    loss = mse_loss(prediction, gt)
    jax.block_until_ready(loss)
    ref = _reference(prediction, gt)
    assert jnp.allclose(loss, ref, rtol=1e-5, atol=1e-6), (loss, ref)

    # Awkward-H test with a tiny block budget: exercises multi-tile pipelining,
    # ragged-tail row masking, the clamped overshoot tile, and the 2-way
    # spatial 'parallel' split.
    N2, C2, H2, W2 = 2, 3, 72, 16
    pred2 = jax.random.normal(k3, (N2, C2, H2, W2), dtype=jnp.float32)
    gt2 = jax.random.normal(k4, (N2, 1, H2, W2), dtype=jnp.float32)
    gt2 = jnp.where(gt2 > 0.3, gt2, 0.0)

    loss2 = mse_loss(pred2, gt2, target_block_bytes=4096)
    jax.block_until_ready(loss2)
    ref2 = _reference(pred2, gt2)
    assert jnp.allclose(loss2, ref2, rtol=1e-5, atol=1e-6), (loss2, ref2)

    print("KERNEL_OK")
</pallas_src>

<mosaic_0001>
module attributes {stable_mosaic.version = 11 : i64} {
  func.func @_mse_loss_kernel(%arg0: i32, %arg1: i32, %arg2: i32, %arg3: memref<1x1x16x16xf32, #tpu.memory_space<vmem>>, %arg4: memref<1x1x16x16xf32, #tpu.memory_space<vmem>>, %arg5: memref<1x1x1x1xf32, #tpu.memory_space<vmem>>, %arg6: memref<1x1x1x1xf32, #tpu.memory_space<vmem>>, %arg7: memref<1x1x16x16xf32, #tpu.memory_space<vmem>>, %arg8: memref<1x1x16x16xf32, #tpu.memory_space<vmem>>) attributes {dimension_semantics = [#tpu.dimension_semantics<parallel>, #tpu.dimension_semantics<parallel>, #tpu.dimension_semantics<arbitrary>], iteration_bounds = array<i64: 2, 1, 1>, scalar_prefetch = 0 : i64, scratch_operands = 2 : i64, tpu.core_type = #tpu.core_type<tc>, window_params = [{transform_indices = @transform_0, window_bounds = array<i64: 1, 1, 16, 16>}, {transform_indices = @transform_1, window_bounds = array<i64: 1, 1, 16, 16>}, {transform_indices = @transform_2, window_bounds = array<i64: 1, 1, 1, 1>}, {transform_indices = @transform_3, window_bounds = array<i64: 1, 1, 1, 1>}]} {
    %c0_i32 = arith.constant 0 : i32
    %0 = arith.cmpi eq, %arg2, %c0_i32 : i32
    %1 = arith.extui %0 : i1 to i32
    %c0_i32_0 = arith.constant 0 : i32
    %2 = arith.cmpi ne, %1, %c0_i32_0 : i32
    scf.if %2 {
      %cst_27 = arith.constant 0.000000e+00 : f32
      %22 = vector.broadcast %cst_27 : f32 to vector<1x1x16x16xf32>
      %c0_28 = arith.constant 0 : index
      %c0_29 = arith.constant 0 : index
      %c0_30 = arith.constant 0 : index
      %c0_31 = arith.constant 0 : index
      %23 = vector.load %arg7[%c0_28, %c0_29, %c0_30, %c0_31] : memref<1x1x16x16xf32, #tpu.memory_space<vmem>>, vector<1x1x16x16xf32>
      tpu.vector_store %arg7[%c0_28, %c0_29, %c0_30, %c0_31], %22 {strides = array<i32>} : memref<1x1x16x16xf32, #tpu.memory_space<vmem>>, vector<1x1x16x16xf32>,
      %cst_32 = arith.constant 0.000000e+00 : f32
      %24 = vector.broadcast %cst_32 : f32 to vector<1x1x16x16xf32>
      %c0_33 = arith.constant 0 : index
      %c0_34 = arith.constant 0 : index
      %c0_35 = arith.constant 0 : index
      %c0_36 = arith.constant 0 : index
      %25 = vector.load %arg8[%c0_33, %c0_34, %c0_35, %c0_36] : memref<1x1x16x16xf32, #tpu.memory_space<vmem>>, vector<1x1x16x16xf32>
      tpu.vector_store %arg8[%c0_33, %c0_34, %c0_35, %c0_36], %24 {strides = array<i32>} : memref<1x1x16x16xf32, #tpu.memory_space<vmem>>, vector<1x1x16x16xf32>,
    } else {
    }
    %c0 = arith.constant 0 : index
    %c0_1 = arith.constant 0 : index
    %c0_2 = arith.constant 0 : index
    %c0_3 = arith.constant 0 : index
    %3 = vector.load %arg3[%c0, %c0_1, %c0_2, %c0_3] : memref<1x1x16x16xf32, #tpu.memory_space<vmem>>, vector<1x1x16x16xf32>
    %c0_4 = arith.constant 0 : index
    %c0_5 = arith.constant 0 : index
    %c0_6 = arith.constant 0 : index
    %c0_7 = arith.constant 0 : index
    %4 = vector.load %arg4[%c0_4, %c0_5, %c0_6, %c0_7] : memref<1x1x16x16xf32, #tpu.memory_space<vmem>>, vector<1x1x16x16xf32>
    %cst = arith.constant 0.000000e+00 : f32
    %5 = vector.broadcast %cst : f32 to vector<1x1x16x16xf32>
    %6 = arith.cmpf ogt, %4, %5 : vector<1x1x16x16xf32>
    %7 = arith.subf %3, %4 : vector<1x1x16x16xf32>
    %cst_8 = arith.constant 0.000000e+00 : f32
    %8 = vector.broadcast %cst_8 : f32 to vector<1x1x16x16xf32>
    %9 = arith.select %6, %7, %8 : vector<1x1x16x16xi1>, vector<1x1x16x16xf32>
    %c0_9 = arith.constant 0 : index
    %c0_10 = arith.constant 0 : index
    %c0_11 = arith.constant 0 : index
    %c0_12 = arith.constant 0 : index
    %10 = vector.load %arg7[%c0_9, %c0_10, %c0_11, %c0_12] : memref<1x1x16x16xf32, #tpu.memory_space<vmem>>, vector<1x1x16x16xf32>
    %11 = arith.mulf %9, %9 : vector<1x1x16x16xf32>
    %12 = arith.addf %10, %11 : vector<1x1x16x16xf32>
    %c0_13 = arith.constant 0 : index
    %c0_14 = arith.constant 0 : index
    %c0_15 = arith.constant 0 : index
    %c0_16 = arith.constant 0 : index
    %13 = vector.load %arg7[%c0_13, %c0_14, %c0_15, %c0_16] : memref<1x1x16x16xf32, #tpu.memory_space<vmem>>, vector<1x1x16x16xf32>
    tpu.vector_store %arg7[%c0_13, %c0_14, %c0_15, %c0_16], %12 {strides = array<i32>} : memref<1x1x16x16xf32, #tpu.memory_space<vmem>>, vector<1x1x16x16xf32>,
    %c0_17 = arith.constant 0 : index
    %c0_18 = arith.constant 0 : index
    %c0_19 = arith.constant 0 : index
    %c0_20 = arith.constant 0 : index
    %14 = vector.load %arg8[%c0_17, %c0_18, %c0_19, %c0_20] : memref<1x1x16x16xf32, #tpu.memory_space<vmem>>, vector<1x1x16x16xf32>
    %15 = arith.extui %6 : vector<1x1x16x16xi1> to vector<1x1x16x16xi32>
    %16 = arith.sitofp %15 : vector<1x1x16x16xi32> to vector<1x1x16x16xf32>
    %17 = arith.addf %14, %16 : vector<1x1x16x16xf32>
    %c0_21 = arith.constant 0 : index
    %c0_22 = arith.constant 0 : index
    %c0_23 = arith.constant 0 : index
    %c0_24 = arith.constant 0 : index
    %18 = vector.load %arg8[%c0_21, %c0_22, %c0_23, %c0_24] : memref<1x1x16x16xf32, #tpu.memory_space<vmem>>, vector<1x1x16x16xf32>
    tpu.vector_store %arg8[%c0_21, %c0_22, %c0_23, %c0_24], %17 {strides = array<i32>} : memref<1x1x16x16xf32, #tpu.memory_space<vmem>>, vector<1x1x16x16xf32>,
    %c0_i32_25 = arith.constant 0 : i32
    %19 = arith.cmpi eq, %arg2, %c0_i32_25 : i32
    %20 = arith.extui %19 : i1 to i32
    %c0_i32_26 = arith.constant 0 : i32
    %21 = arith.cmpi ne, %20, %c0_i32_26 : i32
    scf.if %21 {
      %c0_27 = arith.constant 0 : index
      %c0_28 = arith.constant 0 : index
      %c0_29 = arith.constant 0 : index
      %c0_30 = arith.constant 0 : index
      %22 = vector.load %arg7[%c0_27, %c0_28, %c0_29, %c0_30] : memref<1x1x16x16xf32, #tpu.memory_space<vmem>>, vector<1x1x16x16xf32>
      %23 = vector.shape_cast %22 : vector<1x1x16x16xf32> to vector<1x1x1x16x16xf32>
      %cst_31 = arith.constant dense<0.000000e+00> : vector<1xf32>
      %24 = vector.multi_reduction <add>, %23, %cst_31 [1, 2, 3, 4] : vector<1x1x1x16x16xf32> to vector<1xf32>
      %25 = vector.shape_cast %24 : vector<1xf32> to vector<1x1x1x1x1xf32>
      %26 = vector.extract %25[0, 0, 0, 0, 0] : f32 from vector<1x1x1x1x1xf32>
      %27 = vector.broadcast %26 : f32 to vector<1x1x1x1xf32>
      %c0_32 = arith.constant 0 : index
      %c0_33 = arith.constant 0 : index
      %c0_34 = arith.constant 0 : index
      %c0_35 = arith.constant 0 : index
      %28 = vector.load %arg5[%c0_32, %c0_33, %c0_34, %c0_35] : memref<1x1x1x1xf32, #tpu.memory_space<vmem>>, vector<1x1x1x1xf32>
      tpu.vector_store %arg5[%c0_32, %c0_33, %c0_34, %c0_35], %27 {strides = array<i32>} : memref<1x1x1x1xf32, #tpu.memory_space<vmem>>, vector<1x1x1x1xf32>,
      %c0_36 = arith.constant 0 : index
      %c0_37 = arith.constant 0 : index
      %c0_38 = arith.constant 0 : index
      %c0_39 = arith.constant 0 : index
      %29 = vector.load %arg8[%c0_36, %c0_37, %c0_38, %c0_39] : memref<1x1x16x16xf32, #tpu.memory_space<vmem>>, vector<1x1x16x16xf32>
      %30 = vector.shape_cast %29 : vector<1x1x16x16xf32> to vector<1x1x1x16x16xf32>
      %cst_40 = arith.constant dense<0.000000e+00> : vector<1xf32>
      %31 = vector.multi_reduction <add>, %30, %cst_40 [1, 2, 3, 4] : vector<1x1x1x16x16xf32> to vector<1xf32>
      %32 = vector.shape_cast %31 : vector<1xf32> to vector<1x1x1x1x1xf32>
      %33 = vector.extract %32[0, 0, 0, 0, 0] : f32 from vector<1x1x1x1x1xf32>
      %34 = vector.broadcast %33 : f32 to vector<1x1x1x1xf32>
      %c0_41 = arith.constant 0 : index
      %c0_42 = arith.constant 0 : index
      %c0_43 = arith.constant 0 : index
      %c0_44 = arith.constant 0 : index
      %35 = vector.load %arg6[%c0_41, %c0_42, %c0_43, %c0_44] : memref<1x1x1x1xf32, #tpu.memory_space<vmem>>, vector<1x1x1x1xf32>
      tpu.vector_store %arg6[%c0_41, %c0_42, %c0_43, %c0_44], %34 {strides = array<i32>} : memref<1x1x1x1xf32, #tpu.memory_space<vmem>>, vector<1x1x1x1xf32>,
    } else {
    }
    return
  }
  func.func @transform_0(%arg0: i32, %arg1: i32, %arg2: i32) -> (i32, i32, i32, i32) {
    %c1_i32 = arith.constant 1 : i32
    %0 = arith.muli %arg1, %c1_i32 : i32
    %1 = arith.addi %0, %arg2 : i32
    %c0_i32 = arith.constant 0 : i32
    %c0_i32_0 = arith.constant 0 : i32
    %c0_i32_1 = arith.constant 0 : i32
    return %arg0, %c0_i32, %1, %c0_i32_0 : i32, i32, i32, i32
  }
  func.func @transform_1(%arg0: i32, %arg1: i32, %arg2: i32) -> (i32, i32, i32, i32) {
    %c1_i32 = arith.constant 1 : i32
    %0 = arith.muli %arg1, %c1_i32 : i32
    %1 = arith.addi %0, %arg2 : i32
    %c0_i32 = arith.constant 0 : i32
    %c0_i32_0 = arith.constant 0 : i32
    %c0_i32_1 = arith.constant 0 : i32
    return %arg0, %c0_i32, %1, %c0_i32_0 : i32, i32, i32, i32
  }
  func.func @transform_2(%arg0: i32, %arg1: i32, %arg2: i32) -> (i32, i32, i32, i32) {
    %c0_i32 = arith.constant 0 : i32
    %c0_i32_0 = arith.constant 0 : i32
    %c0_i32_1 = arith.constant 0 : i32
    return %arg1, %arg0, %c0_i32, %c0_i32_0 : i32, i32, i32, i32
  }
  func.func @transform_3(%arg0: i32, %arg1: i32, %arg2: i32) -> (i32, i32, i32, i32) {
    %c0_i32 = arith.constant 0 : i32
    %c0_i32_0 = arith.constant 0 : i32
    %c0_i32_1 = arith.constant 0 : i32
    return %arg1, %arg0, %c0_i32, %c0_i32_0 : i32, i32, i32, i32
  }
}

</mosaic_0001>

<llo_original>
// kernel: mse_loss.1
$region0: #{mse_loss.1}
  #allocation0 [shape = 'u32[]', space=smem, size = 0x4, offset = 0x4, fixed_abs, tag = 'smem constant byte address 0x4 - core index']
  #allocation1 [shape = 'u32[72,128]{1,0:T(1,128)}', space=vmem, size = 0x9000, scoped, tag = 'internal scratch']
  #allocation2 [shape = 'f32[1,1,16,16]{3,2,1,0:T(8,128)}', space=vmem, size = 0x2000, scoped, tag = 'scratch operand']
  #allocation3 [shape = 'f32[1,1,16,16]{3,2,1,0:T(8,128)}', space=vmem, size = 0x2000, scoped, tag = 'scratch operand']
  %s0 = inlined_call_operand.hbm [shape: f32[2,4,16,16], index: 0, kind: input, shape index: {}]
  %s1 = inlined_call_operand.hbm [shape: f32[2,1,16,16], index: 1, kind: input, shape index: {}]
  %s2 = inlined_call_operand.vmem [shape: f32[1,2,1,1], index: 2, kind: output, shape index: {0}]
  %s3 = inlined_call_operand.vmem [shape: f32[1,2,1,1], index: 3, kind: output, shape index: {1}]
  %4 = xla_tuple %s2, %s3
  %s5 = sld [smem:[#allocation0]]
  $region65: #{mse_loss.1} parent=0
    _
  %s7 = ssub.s32 1, %s5
  %s8 = scalar_select 0, %s7, %s5
  $region1: #{mse_loss.1} parent=0
    #allocation4 [shape = 'u8[16384]{0}', space=vmem, size = 0x4000, scoped, tag = 'input window, operand 0']
    #allocation5 [shape = 's32[2]{0}', space=sflag, size = 0x8, scoped, tag = 'scoped memory for mse_loss.1']
    #allocation6 [shape = 'u8[16384]{0}', space=vmem, size = 0x4000, scoped, tag = 'input window, operand 1']
    #allocation7 [shape = 's32[2]{0}', space=sflag, size = 0x8, scoped, tag = 'scoped memory for mse_loss.1']
    %9 = vsyncpa [#allocation5], 0
    %s10 = scalar_lea.sflag [#allocation5], 1
    %11 = vsyncpa %s10, 0
    %12 = vsyncpa [#allocation7], 0
    %s13 = scalar_lea.sflag [#allocation7], 1
    %14 = vsyncpa %s13, 0
    loop: start=0, step=1, limit=4
    $region2: #{mse_loss.1} parent=1 // loop_pre_header
      _
    $region3: #{mse_loss.1} parent=1 // loop_header
      %s16 = sphi 0, %s20
      %p17 = scmp.ge.s32.totalorder %s16, 4
      %s23 = sphi 0, %s42
      %s24 = sphi 0, %s38
      %s25 = sphi 0, %s34
      %s26 = sphi 0, %s23
      %s27 = sphi 0, %s24
      %s28 = sphi 0, %s25
      %s29 = sphi 0, %s26
      %s30 = sphi 0, %s27
      %s31 = sphi 0, %s28
      %s49 = sphi 0, %s51
      %s52 = sphi 0, %s49
      %s53 = sphi 0, %s52
      %s69 = sphi 0, %s53
      %s79 = sphi 0, %s81
      %s82 = sphi 0, %s79
      %s83 = sphi 0, %s82
      %s99 = sphi 0, %s83
      %s107 = sphi 0, %s109
      %s110 = sphi 0, %s107
      %s111 = sphi 0, %s110
      %s127 = sphi 0, %s111
      %s135 = sphi 0, %s137
      %s138 = sphi 0, %s135
      %s139 = sphi 0, %s138
      %s155 = sphi 0, %s139
    $region4: #{mse_loss.1} parent=1 // loop_header_branch
      %19 = sbr.rel (%p17) target = $region8
    $region5: #{mse_loss.1} parent=1 // loop_body
      %s21 = ssub.s32 %s16, 1
      %s22 = ssub.s32 %s16, 2
      %s32 = sadd.s32 1, %s25
      %p33 = scmp.ge.s32.totalorder %s32, 1
      %s34 = scalar_select %p33, 0, %s32
      %s35 = sadd.s32 1, %s24
      %s36 = scalar_select %p33, %s35, %s24
      %p37 = scmp.ge.s32.totalorder %s36, 1
      %s38 = scalar_select %p37, 0, %s36
      %s39 = sadd.s32 1, %s23
      %s40 = scalar_select %p37, %s39, %s23
      %p41 = scmp.ge.s32.totalorder %s40, 2
      %s42 = scalar_select %p41, 0, %s40
      %s43 = sadd.s32 %s24, %s25
      %s44 = sadd.s32 %s38, %s34
      %s45 = ssub.s32 %s23, %s42
      %s46 = ssub.s32 %s43, %s44
      %s47 = sor.u32 %s45, %s46
      %p48 = scmp.eq.s32.totalorder %s47, 0
      %s50 = sadd.s32 %s49, 1
      %s51 = scalar_select %p48, %s49, %s50
      %p54 = pneg %p48
      %p55 = scmp.eq.s32.totalorder %s16, 1
      %p56 = por %p54, %p55
      %p57 = scmp.ne.s32.totalorder %s49, %s52
      %p58 = scmp.eq.s32.totalorder %s16, 0
      %p59 = por %p57, %p58
      %p60 = scmp.ne.s32.totalorder %s49, %s52
      %p61 = scmp.eq.s32.totalorder %s21, 1
      %p62 = por %p60, %p61
      %p63 = scmp.ne.s32.totalorder %s52, %s53
      %p64 = scmp.eq.s32.totalorder %s21, 0
      %p65 = por %p63, %p64
      %p66 = scmp.ne.s32.totalorder %s52, %s53
      %p67 = scmp.eq.s32.totalorder %s22, 1
      %p68 = por %p66, %p67
      %p70 = scmp.ne.s32.totalorder %s53, %s69
      %p71 = scmp.eq.s32.totalorder %s22, 0
      %p72 = por %p70, %p71
      %s73 = sadd.s32 %s24, %s25
      %s74 = sadd.s32 %s38, %s34
      %s75 = ssub.s32 %s23, %s42
      %s76 = ssub.s32 %s73, %s74
      %s77 = sor.u32 %s75, %s76
      %p78 = scmp.eq.s32.totalorder %s77, 0
      %s80 = sadd.s32 %s79, 1
      %s81 = scalar_select %p78, %s79, %s80
      %p84 = pneg %p78
      %p85 = scmp.eq.s32.totalorder %s16, 1
      %p86 = por %p84, %p85
      %p87 = scmp.ne.s32.totalorder %s79, %s82
      %p88 = scmp.eq.s32.totalorder %s16, 0
      %p89 = por %p87, %p88
      %p90 = scmp.ne.s32.totalorder %s79, %s82
      %p91 = scmp.eq.s32.totalorder %s21, 1
      %p92 = por %p90, %p91
      %p93 = scmp.ne.s32.totalorder %s82, %s83
      %p94 = scmp.eq.s32.totalorder %s21, 0
      %p95 = por %p93, %p94
      %p96 = scmp.ne.s32.totalorder %s82, %s83
      %p97 = scmp.eq.s32.totalorder %s22, 1
      %p98 = por %p96, %p97
      %p100 = scmp.ne.s32.totalorder %s83, %s99
      %p101 = scmp.eq.s32.totalorder %s22, 0
      %p102 = por %p100, %p101
      %s103 = ssub.s32 %s24, %s38
      %s104 = ssub.s32 %s23, %s42
      %s105 = sor.u32 %s103, %s104
      %p106 = scmp.eq.s32.totalorder %s105, 0
      %s108 = sadd.s32 %s107, 1
      %s109 = scalar_select %p106, %s107, %s108
      %p112 = pneg %p106
      %p113 = scmp.eq.s32.totalorder %s16, 1
      %p114 = por %p112, %p113
      %p115 = scmp.ne.s32.totalorder %s107, %s110
      %p116 = scmp.eq.s32.totalorder %s16, 0
      %p117 = por %p115, %p116
      %p118 = scmp.ne.s32.totalorder %s107, %s110
      %p119 = scmp.eq.s32.totalorder %s21, 1
      %p120 = por %p118, %p119
      %p121 = scmp.ne.s32.totalorder %s110, %s111
      %p122 = scmp.eq.s32.totalorder %s21, 0
      %p123 = por %p121, %p122
      %p124 = scmp.ne.s32.totalorder %s110, %s111
      %p125 = scmp.eq.s32.totalorder %s22, 1
      %p126 = por %p124, %p125
      %p128 = scmp.ne.s32.totalorder %s111, %s127
      %p129 = scmp.eq.s32.totalorder %s22, 0
      %p130 = por %p128, %p129
      %s131 = ssub.s32 %s24, %s38
      %s132 = ssub.s32 %s23, %s42
      %s133 = sor.u32 %s131, %s132
      %p134 = scmp.eq.s32.totalorder %s133, 0
      %s136 = sadd.s32 %s135, 1
      %s137 = scalar_select %p134, %s135, %s136
      %p140 = pneg %p134
      %p141 = scmp.eq.s32.totalorder %s16, 1
      %p142 = por %p140, %p141
      %p143 = scmp.ne.s32.totalorder %s135, %s138
      %p144 = scmp.eq.s32.totalorder %s16, 0
      %p145 = por %p143, %p144
      %p146 = scmp.ne.s32.totalorder %s135, %s138
      %p147 = scmp.eq.s32.totalorder %s21, 1
      %p148 = por %p146, %p147
      %p149 = scmp.ne.s32.totalorder %s138, %s139
      %p150 = scmp.eq.s32.totalorder %s21, 0
      %p151 = por %p149, %p150
      %p152 = scmp.ne.s32.totalorder %s138, %s139
      %p153 = scmp.eq.s32.totalorder %s22, 1
      %p154 = por %p152, %p153
      %p156 = scmp.ne.s32.totalorder %s139, %s155
      %p157 = scmp.eq.s32.totalorder %s22, 0
      %p158 = por %p156, %p157
      %p159 = scmp.le.s32.totalorder 1, %s16
      %p160 = scmp.lt.s32.totalorder %s16, 3
      %p161 = pnand %p159, %p160
      %p162 = pneg %p161
      // Predicated region
      $region9: #{mse_loss.1} parent=5 // pred_check
        _
      $region10: #{mse_loss.1} parent=5 // pred_check_branch
        %164 = sbr.rel (%p161) target = $region12
      $region11: #{mse_loss.1} parent=5 // pred_region
        %s165 = ssub.s32 %s16, 1
      $region12: #{mse_loss.1} parent=5 // pred_fallthru
        _
      %p166 = scmp.lt.s32.totalorder %s16, 2
      // Predicated region
      $region13: #{mse_loss.1} parent=5 // pred_check
        %p167 = pneg %p166
      $region14: #{mse_loss.1} parent=5 // pred_check_branch
        %169 = sbr.rel (%p167) target = $region16
      $region15: #{mse_loss.1} parent=5 // pred_region
        // Predicated region
        $region17: #{mse_loss.1} parent=15 // pred_check
          %p170 = pneg %p59
        $region18: #{mse_loss.1} parent=15 // pred_check_branch
          %172 = sbr.rel (%p170) target = $region20
        $region19: #{mse_loss.1} parent=15 // pred_region
          %s173 = sand.u32 %s49, 1
          %s174 = scalar_lea.sflag [#allocation5], %s173
          %s175 = sand.u32 %s49, 1
          %s176 = smul.addr %s175, 16
          %s177 = scalar_lea.vmem [#allocation4], %s176
          %s178 = sadd.s32 %s24, %s25
          %s179 = smul.u32 2, %s178
          %181 = vsyncadd %s174, 0
          %s182 = smul.addr %s23, 8
          %s183 = sadd.s32 %s179, %s182
          %s184 = smul.addr %s183, 8
          %s185 = scalar_lea.hbm %s0, %s184
          %s186 = sshll.u32 %s185, 4
          %s187 = int_to_ptr.hbm [resolvable:$true] %s186
          %s188 = sshll.u32 %s177, 4
          %s189 = int_to_ptr.vmem [resolvable:$true] %s188
          %194 = dma.hbm_to_vmem [thread:$0]  %s187, 256, %s189, %s174, 128, 128, 8
        $region20: #{mse_loss.1} parent=15 // pred_fallthru
          _
        // Predicated region
        $region21: #{mse_loss.1} parent=15 // pred_check
          %p195 = pneg %p89
        $region22: #{mse_loss.1} parent=15 // pred_check_branch
          %197 = sbr.rel (%p195) target = $region24
        $region23: #{mse_loss.1} parent=15 // pred_region
          %s198 = sand.u32 %s79, 1
          %s199 = scalar_lea.sflag [#allocation7], %s198
          %s200 = sand.u32 %s79, 1
          %s201 = smul.addr %s200, 16
          %s202 = scalar_lea.vmem [#allocation6], %s201
          %s203 = sadd.s32 %s24, %s25
          %s204 = smul.u32 2, %s203
          %206 = vsyncadd %s199, 0
          %s207 = smul.addr %s23, 2
          %s208 = sadd.s32 %s204, %s207
          %s209 = smul.addr %s208, 8
          %s210 = scalar_lea.hbm %s1, %s209
          %s211 = sshll.u32 %s210, 4
          %s212 = int_to_ptr.hbm [resolvable:$true] %s211
          %s213 = sshll.u32 %s202, 4
          %s214 = int_to_ptr.vmem [resolvable:$true] %s213
          %219 = dma.hbm_to_vmem [thread:$0]  %s212, 256, %s214, %s199, 128, 128, 8
        $region24: #{mse_loss.1} parent=15 // pred_fallthru
          _
      $region16: #{mse_loss.1} parent=5 // pred_fallthru
        _
      %p220 = scmp.le.s32.totalorder 1, %s16
      %p221 = scmp.lt.s32.totalorder %s16, 3
      %p222 = pnand %p220, %p221
      %p223 = pneg %p222
      // Predicated region
      $region25: #{mse_loss.1} parent=5 // pred_check
        _
      $region26: #{mse_loss.1} parent=5 // pred_check_branch
        %225 = sbr.rel (%p222) target = $region28
      $region27: #{mse_loss.1} parent=5 // pred_region
        %s226 = ssub.s32 %s16, 1
        %s227 = sand.u32 %s52, 1
        %s228 = scalar_lea.sflag [#allocation5], %s227
        %s229 = sand.u32 %s52, 1
        %s230 = smul.addr %s229, 16
        %s231 = scalar_lea.vmem [#allocation4], %s230
        // Predicated region
        $region29: #{mse_loss.1} parent=27 // pred_check
          %p232 = pneg %p65
        $region30: #{mse_loss.1} parent=27 // pred_check_branch
          %234 = sbr.rel (%p232) target = $region32
        $region31: #{mse_loss.1} parent=27 // pred_region
          %236 = dma.done %s228, 256
        $region32: #{mse_loss.1} parent=27 // pred_fallthru
          _
        %s237 = sand.u32 %s82, 1
        %s238 = scalar_lea.sflag [#allocation7], %s237
        %s239 = sand.u32 %s82, 1
        %s240 = smul.addr %s239, 16
        %s241 = scalar_lea.vmem [#allocation6], %s240
        // Predicated region
        $region33: #{mse_loss.1} parent=27 // pred_check
          %p242 = pneg %p95
        $region34: #{mse_loss.1} parent=27 // pred_check_branch
          %244 = sbr.rel (%p242) target = $region36
        $region35: #{mse_loss.1} parent=27 // pred_region
          %246 = dma.done %s238, 256
        $region36: #{mse_loss.1} parent=27 // pred_fallthru
          _
        %s247 = sand.u32 %s52, 1
        %s248 = scalar_lea.sflag [#allocation5], %s247
        %s249 = sand.u32 %s52, 1
        %s250 = smul.addr %s249, 16
        %s251 = scalar_lea.vmem [#allocation4], %s250
        %p252 = pneg %p65
        %p253 = pneg %p62
        %s254 = sand.u32 %s82, 1
        %s255 = scalar_lea.sflag [#allocation7], %s254
        %s256 = sand.u32 %s82, 1
        %s257 = smul.addr %s256, 16
        %s258 = scalar_lea.vmem [#allocation6], %s257
        %p259 = pneg %p95
        %p260 = pneg %p92
        %p261 = pneg %p123
        %p262 = pneg %p120
        %p263 = scmp.lt.s32.totalorder %s27, 0
        %s264 = scalar_select %p263, %s27, 0
        %p265 = scmp.lt.s32.totalorder %s26, 1
        %s266 = scalar_select %p265, %s26, 1
        %s267 = smul.addr %s264, 2
        %s268 = sadd.s32 %s266, %s267
        %s269 = scalar_lea.vmem %s2, %s268
        %p270 = pneg %p151
        %p271 = pneg %p148
        %p272 = scmp.lt.s32.totalorder %s27, 0
        %s273 = scalar_select %p272, %s27, 0
        %p274 = scmp.lt.s32.totalorder %s26, 1
        %s275 = scalar_select %p274, %s26, 1
        %s276 = smul.addr %s273, 2
        %s277 = sadd.s32 %s275, %s276
        %s278 = scalar_lea.vmem %s3, %s277
        %s279 = sadd.s32 %s27, %s28
        %s280 = smul.u32 2, %s279
        %s281 = sadd.s32 %s27, %s28
        %s282 = smul.u32 2, %s281
        %p283 = scmp.lt.s32.totalorder %s27, 0
        %s284 = scalar_select %p283, %s27, 0
        %p285 = scmp.lt.s32.totalorder %s26, 1
        %s286 = scalar_select %p285, %s26, 1
        %s287 = smul.addr %s284, 2
        %s288 = sadd.s32 %s286, %s287
        %s289 = scalar_lea.vmem %s2, %s288
        %p290 = scmp.lt.s32.totalorder %s27, 0
        %s291 = scalar_select %p290, %s27, 0
        %p292 = scmp.lt.s32.totalorder %s26, 1
        %s293 = scalar_select %p292, %s26, 1
        %s294 = smul.addr %s291, 2
        %s295 = sadd.s32 %s293, %s294
        %s296 = scalar_lea.vmem %s3, %s295
        %p297 = scmp.eq.s32.totalorder %s28, 0
        // Predicated region
        $region37: #{mse_loss.1} parent=27 // pred_check
          %p298 = pneg %p297
        $region38: #{mse_loss.1} parent=27 // pred_check_branch
          %300 = sbr.rel (%p298) target = $region40
        $region39: #{mse_loss.1} parent=27 // pred_region
          %vm301 = vcmask 130048
          %302 = vst.msk [vmem:[#allocation2] sm:$0xff] %vm301, 0.0
          %303 = vst.msk [vmem:[#allocation2 + $0x8] sm:$0xff] %vm301, 0.0
          %304 = vst.msk [vmem:[#allocation3] sm:$0xff] %vm301, 0.0
          %305 = vst.msk [vmem:[#allocation3 + $0x8] sm:$0xff] %vm301, 0.0
        $region40: #{mse_loss.1} parent=27 // pred_fallthru
          _
        %v306 = vld [vmem:[%s231] sm:$0xff]
        %v307 = vld [vmem:[%s231 + $0x8] sm:$0xff]
        %v308 = vld [vmem:[%s241] sm:$0xff]
        %v309 = vld [vmem:[%s241 + $0x8] sm:$0xff]
        %vm310 = vcmp.gt.f32.partialorder %v308, 0.0
        %vm311 = vcmp.gt.f32.partialorder %v309, 0.0
        %v312 = vsub.f32 %v306, %v308
        %v313 = vsub.f32 %v307, %v309
        %v314 = vsel %vm310, %v312, 0.0
        %v315 = vsel %vm311, %v313, 0.0
        %v316 = vld [vmem:[#allocation2] sm:$0xff]
        %v317 = vld [vmem:[#allocation2 + $0x8] sm:$0xff]
        %v318 = vmul.f32 %v314, %v314
        %v319 = vmul.f32 %v315, %v315
        %v320 = vadd.f32 %v316, %v318
        %v321 = vadd.f32 %v317, %v319
        %vm322 = vcmask 130048
        %323 = vst.msk [vmem:[#allocation2] sm:$0xff] %vm322, %v320
        %324 = vst.msk [vmem:[#allocation2 + $0x8] sm:$0xff] %vm322, %v321
        %v325 = vld [vmem:[#allocation3] sm:$0xff]
        %v326 = vld [vmem:[#allocation3 + $0x8] sm:$0xff]
        %v327 = vsel %vm310, 1, 0
        %v328 = vsel %vm311, 1, 0
        %v329 = vcvt.s32.f32 %v327
        %v330 = vcvt.s32.f32 %v328
        %v331 = vadd.f32 %v325, %v329
        %v332 = vadd.f32 %v326, %v330
        %333 = vst.msk [vmem:[#allocation3] sm:$0xff] %vm322, %v331
        %334 = vst.msk [vmem:[#allocation3 + $0x8] sm:$0xff] %vm322, %v332
        // Predicated region
        $region41: #{mse_loss.1} parent=27 // pred_check
          %p335 = pneg %p297
        $region42: #{mse_loss.1} parent=27 // pred_check_branch
          %337 = sbr.rel (%p335) target = $region44
        $region43: #{mse_loss.1} parent=27 // pred_region
          %v338 = vld [vmem:[#allocation2] sm:$0xff]
          %v339 = vld [vmem:[#allocation2 + $0x8] sm:$0xff]
          %v340 = vsel %vm322, %v338, 0.0
          %v341 = vsel %vm322, %v339, 0.0
          %v342 = vadd.f32 %v340, %v341
          %343 = vadd.xlane.f32.xlu0 %v342
          %v344 = vpop.xlane.xlu0 %343
          %v345 = vrot.slane %v344, 4
          %v346 = vadd.f32 %v344, %v345
          %v347 = vrot.slane %v346, 2
          %v348 = vadd.f32 %v346, %v347
          %v349 = vrot.slane %v348, 1
          %v350 = vadd.f32 %v348, %v349
          %s351 = vtos %v350
          %v352 = vstv %s351
          %vm353 = vcmask 0
          %354 = vst.msk [vmem:[%s289] sm:$0x1] %vm353, %v352
          %v355 = vld [vmem:[#allocation3] sm:$0xff]
          %v356 = vld [vmem:[#allocation3 + $0x8] sm:$0xff]
          %v357 = vsel %vm322, %v355, 0.0
          %v358 = vsel %vm322, %v356, 0.0
          %v359 = vadd.f32 %v357, %v358
          %360 = vadd.xlane.f32.xlu0 %v359
          %v361 = vpop.xlane.xlu0 %360
          %v362 = vrot.slane %v361, 4
          %v363 = vadd.f32 %v361, %v362
          %v364 = vrot.slane %v363, 2
          %v365 = vadd.f32 %v363, %v364
          %v366 = vrot.slane %v365, 1
          %v367 = vadd.f32 %v365, %v366
          %s368 = vtos %v367
          %v369 = vstv %s368
          %370 = vst.msk [vmem:[%s296] sm:$0x1] %vm353, %v369
        $region44: #{mse_loss.1} parent=27 // pred_fallthru
          _
        %p371 = scmp.lt.s32.totalorder %s27, 0
        %s372 = scalar_select %p371, %s27, 0
        %p373 = scmp.lt.s32.totalorder %s26, 1
        %s374 = scalar_select %p373, %s26, 1
        %s375 = smul.addr %s372, 2
        %s376 = sadd.s32 %s374, %s375
        %s377 = scalar_lea.vmem %s2, %s376
        %p378 = scmp.lt.s32.totalorder %s27, 0
        %s379 = scalar_select %p378, %s27, 0
        %p380 = scmp.lt.s32.totalorder %s26, 1
        %s381 = scalar_select %p380, %s26, 1
        %s382 = smul.addr %s379, 2
        %s383 = sadd.s32 %s381, %s382
        %s384 = scalar_lea.vmem %s3, %s383
        // Predicated region
        $region45: #{mse_loss.1} parent=27 // pred_check
          %p385 = pneg %p120
        $region46: #{mse_loss.1} parent=27 // pred_check_branch
          %387 = sbr.rel (%p385) target = $region48
        $region47: #{mse_loss.1} parent=27 // pred_region
          _
        $region48: #{mse_loss.1} parent=27 // pred_fallthru
          _
        // Predicated region
        $region49: #{mse_loss.1} parent=27 // pred_check
          %p388 = pneg %p148
        $region50: #{mse_loss.1} parent=27 // pred_check_branch
          %390 = sbr.rel (%p388) target = $region52
        $region51: #{mse_loss.1} parent=27 // pred_region
          _
        $region52: #{mse_loss.1} parent=27 // pred_fallthru
          _
      $region28: #{mse_loss.1} parent=5 // pred_fallthru
        _
      %p391 = scmp.le.s32.totalorder 2, %s16
      // Predicated region
      $region53: #{mse_loss.1} parent=5 // pred_check
        %p392 = pneg %p391
      $region54: #{mse_loss.1} parent=5 // pred_check_branch
        %394 = sbr.rel (%p392) target = $region56
      $region55: #{mse_loss.1} parent=5 // pred_region
        %s395 = ssub.s32 %s16, 2
        // Predicated region
        $region57: #{mse_loss.1} parent=55 // pred_check
          %p396 = pneg %p126
        $region58: #{mse_loss.1} parent=55 // pred_check_branch
          %398 = sbr.rel (%p396) target = $region60
        $region59: #{mse_loss.1} parent=55 // pred_region
          %p399 = scmp.lt.s32.totalorder %s30, 0
          %s400 = scalar_select %p399, %s30, 0
          %p401 = scmp.lt.s32.totalorder %s29, 1
          %s402 = scalar_select %p401, %s29, 1
          %s403 = smul.addr %s400, 2
          %s404 = sadd.s32 %s402, %s403
          %s405 = scalar_lea.vmem %s2, %s404
        $region60: #{mse_loss.1} parent=55 // pred_fallthru
          _
        // Predicated region
        $region61: #{mse_loss.1} parent=55 // pred_check
          %p406 = pneg %p154
        $region62: #{mse_loss.1} parent=55 // pred_check_branch
          %408 = sbr.rel (%p406) target = $region64
        $region63: #{mse_loss.1} parent=55 // pred_region
          %p409 = scmp.lt.s32.totalorder %s30, 0
          %s410 = scalar_select %p409, %s30, 0
          %p411 = scmp.lt.s32.totalorder %s29, 1
          %s412 = scalar_select %p411, %s29, 1
          %s413 = smul.addr %s410, 2
          %s414 = sadd.s32 %s412, %s413
          %s415 = scalar_lea.vmem %s3, %s414
        $region64: #{mse_loss.1} parent=55 // pred_fallthru
          _
      $region56: #{mse_loss.1} parent=5 // pred_fallthru
        _
    $region6: #{mse_loss.1} parent=1 // loop_footer
      %s20 = sadd.s32 1, %s16
    $region7: #{mse_loss.1} parent=1 // loop_footer_branch
      %15 = sbr.rel target = $region3
    $region8: #{mse_loss.1} parent=1 // loop_exit
      _
    %416 = vsyncpa [#allocation5], 1
    %s417 = scalar_lea.sflag [#allocation5], 1
    %418 = vsyncpa %s417, 1
    %419 = vsyncpa [#allocation7], 1
    %s420 = scalar_lea.sflag [#allocation7], 1
    %421 = vsyncpa %s420, 1

</llo_original>
